<compile_context>
chip_gen: v7x
topology: tpu7x:2x2x1
jax: 0.10.0
libtpu: 0.0.40
codegen_flags: <defaults>
</compile_context>

<pallas_src>
import jax
import jax.numpy as jnp
import numpy as np
from jax.experimental import pallas as pl
from jax.experimental.pallas import tpu as pltpu


def _drr_ave_kernel(w_ref, user_ref, items_ref, o_ref):
    """Fused DRR-AVE state representation for a block of B_blk states.

    w_ref:     (N, 1)          attention weights (shared across the batch)
    user_ref:  (B_blk, 1, F)   user embeddings
    items_ref: (B_blk, N, F)   item history
    o_ref:     (B_blk, 3, F)   rows per state = [user, user * right, right]
    """
    w = w_ref[...]                                   # (N, 1)
    items = items_ref[...]                           # (B_blk, N, F)
    user = user_ref[...]                             # (B_blk, 1, F)

    # right[b, f] = sum_n w[n] * items[b, n, f]
    # VPU multiply + sublane-sum; avoids an M=1 MXU dot (and its FIFO latency)
    # per state.
    right = jnp.sum(items * w[None, :, :], axis=1, keepdims=True)   # (B_blk, 1, F)
    middle = user * right

    # Three static row writes instead of a sublane concatenate.
    o_ref[:, 0:1, :] = user.astype(o_ref.dtype)
    o_ref[:, 1:2, :] = middle.astype(o_ref.dtype)
    o_ref[:, 2:3, :] = right.astype(o_ref.dtype)


def drr_ave_forward_batched(user, items, attention_weights, *, block_b=256):
    """Batched DRR-AVE forward.

    user:               (B, user_features) float32
    items:              (B, n_items, item_features) float32
    attention_weights:  (n_items,) float32
    returns:            (B, 3 * item_features) float32 == per-state
                        concat([user, user*right, right])
    """
    items = items.astype(jnp.float32)
    user = user.astype(jnp.float32)
    B, N, F = items.shape
    # DRR-AVE's elementwise product requires user_features == item_features.
    assert user.size == B * F, "DRR-AVE requires user_features == item_features"
    assert attention_weights.shape == (N,)

    user3 = user.reshape(B, 1, F)
    w2 = attention_weights.astype(jnp.float32).reshape(N, 1)

    b_blk = min(block_b, B)
    n_blocks = pl.cdiv(B, b_blk)
    B_pad = n_blocks * b_blk
    if B_pad != B:
        # Single pad op per input, only when B is not a multiple of the block.
        items = jnp.pad(items, ((0, B_pad - B), (0, 0), (0, 0)))
        user3 = jnp.pad(user3, ((0, B_pad - B), (0, 0), (0, 0)))

    cost = pl.CostEstimate(
        flops=B_pad * (2 * N * F + F),               # weighted sum + elementwise mul
        transcendentals=0,
        bytes_accessed=4 * (N + B_pad * (N * F + F + 3 * F)),
    )

    out = pl.pallas_call(
        _drr_ave_kernel,
        out_shape=jax.ShapeDtypeStruct((B_pad, 3, F), jnp.float32),
        grid=(n_blocks,),
        in_specs=[
            # Full-array blocks (last two dims equal the array dims), so no host
            # padding is needed even though N=5 / F=100 are not (8,128)-aligned.
            pl.BlockSpec((N, 1), lambda b: (0, 0)),
            pl.BlockSpec((b_blk, 1, F), lambda b: (b, 0, 0)),
            pl.BlockSpec((b_blk, N, F), lambda b: (b, 0, 0)),
        ],
        out_specs=pl.BlockSpec((b_blk, 3, F), lambda b: (b, 0, 0)),
        compiler_params=pltpu.CompilerParams(dimension_semantics=("parallel",)),
        cost_estimate=cost,
    )(w2, user3, items)

    if B_pad != B:
        out = out[:B]
    # Contiguous reshape only; no lane slicing.
    return out.reshape(B, 3 * F)


def drr_ave_forward(user, items, attention_weights):
    """Single-state forward matching the PyTorch module.

    user:  (1, user_features) or (user_features,)
    items: (n_items, item_features)
    returns: (3 * item_features,)
    """
    N, F = items.shape
    out = drr_ave_forward_batched(
        user.reshape(1, -1), items.reshape(1, N, F), attention_weights
    )
    return out.reshape(-1)


def init_attention_weights(n_items=5):
    """Matches the PyTorch module init: 0.1 * RandomState(1).rand(n_items)."""
    return jnp.asarray(0.1 * np.random.RandomState(1).rand(n_items), jnp.float32)


if __name__ == "__main__":
    n_items, item_features, user_features = 5, 100, 100

    attention_weights = init_attention_weights(n_items)

    key = jax.random.PRNGKey(0)
    k_user, k_items, k_bu, k_bi = jax.random.split(key, 4)

    # --- single-state (exact module forward semantics) ---
    user = jax.random.normal(k_user, (1, user_features), jnp.float32)
    items = jax.random.normal(k_items, (n_items, item_features), jnp.float32)
    out = jax.block_until_ready(drr_ave_forward(user, items, attention_weights))

    right = items.T @ attention_weights
    user_f = user.reshape(-1)
    ref = jnp.concatenate([user_f, user_f * right, right], axis=0)
    assert out.shape == (3 * item_features,)
    assert jnp.allclose(out, ref, atol=1e-5, rtol=1e-5), float(
        jnp.max(jnp.abs(out - ref))
    )

    # --- batched: many states per pallas_call, grid over the batch axis ---
    B = 16
    busers = jax.random.normal(k_bu, (B, user_features), jnp.float32)
    bitems = jax.random.normal(k_bi, (B, n_items, item_features), jnp.float32)
    bout = jax.block_until_ready(
        drr_ave_forward_batched(busers, bitems, attention_weights, block_b=8)
    )

    bright = jnp.einsum("bnf,n->bf", bitems, attention_weights)
    bref = jnp.concatenate([busers, busers * bright, bright], axis=-1)
    assert bout.shape == (B, 3 * item_features)
    assert jnp.allclose(bout, bref, atol=1e-5, rtol=1e-5), float(
        jnp.max(jnp.abs(bout - bref))
    )

    print("KERNEL_OK")
</pallas_src>

<mosaic_0001>
module attributes {stable_mosaic.version = 11 : i64} {
  func.func @_drr_ave_kernel(%arg0: i32, %arg1: memref<5x1xf32, #tpu.memory_space<vmem>>, %arg2: memref<1x1x100xf32, #tpu.memory_space<vmem>>, %arg3: memref<1x5x100xf32, #tpu.memory_space<vmem>>, %arg4: memref<1x3x100xf32, #tpu.memory_space<vmem>>) attributes {dimension_semantics = [#tpu.dimension_semantics<parallel>], iteration_bounds = array<i64: 1>, scalar_prefetch = 0 : i64, scratch_operands = 0 : i64, tpu.core_type = #tpu.core_type<tc>, window_params = [{pipeline_mode = #tpu.pipeline_mode<synchronous>, transform_indices = @transform_0, window_bounds = array<i64: 5, 1>}, {transform_indices = @transform_1, window_bounds = array<i64: 1, 1, 100>}, {transform_indices = @transform_2, window_bounds = array<i64: 1, 5, 100>}, {transform_indices = @transform_3, window_bounds = array<i64: 1, 3, 100>}]} {
    %c0 = arith.constant 0 : index
    %c0_0 = arith.constant 0 : index
    %0 = vector.load %arg1[%c0, %c0_0] : memref<5x1xf32, #tpu.memory_space<vmem>>, vector<5x1xf32>
    %c0_1 = arith.constant 0 : index
    %c0_2 = arith.constant 0 : index
    %c0_3 = arith.constant 0 : index
    %1 = vector.load %arg3[%c0_1, %c0_2, %c0_3] : memref<1x5x100xf32, #tpu.memory_space<vmem>>, vector<1x5x100xf32>
    %c0_4 = arith.constant 0 : index
    %c0_5 = arith.constant 0 : index
    %c0_6 = arith.constant 0 : index
    %2 = vector.load %arg2[%c0_4, %c0_5, %c0_6] : memref<1x1x100xf32, #tpu.memory_space<vmem>>, vector<1x1x100xf32>
    %3 = vector.shape_cast %0 : vector<5x1xf32> to vector<1x5x1xf32>
    %4 = vector.broadcast %3 : vector<1x5x1xf32> to vector<1x5x100xf32>
    %5 = arith.mulf %1, %4 : vector<1x5x100xf32>
    %cst = arith.constant dense<0.000000e+00> : vector<1x100xf32>
    %6 = vector.multi_reduction <add>, %5, %cst [1] : vector<1x5x100xf32> to vector<1x100xf32>
    %7 = vector.shape_cast %6 : vector<1x100xf32> to vector<1x1x100xf32>
    %8 = arith.mulf %2, %7 : vector<1x1x100xf32>
    %c0_7 = arith.constant 0 : index
    %c0_8 = arith.constant 0 : index
    %c0_9 = arith.constant 0 : index
    %9 = vector.load %arg4[%c0_7, %c0_8, %c0_9] : memref<1x3x100xf32, #tpu.memory_space<vmem>>, vector<1x1x100xf32>
    tpu.vector_store %arg4[%c0_7, %c0_8, %c0_9], %2 {strides = array<i32>} : memref<1x3x100xf32, #tpu.memory_space<vmem>>, vector<1x1x100xf32>,
    %c0_10 = arith.constant 0 : index
    %c1 = arith.constant 1 : index
    %c0_11 = arith.constant 0 : index
    %10 = vector.load %arg4[%c0_10, %c1, %c0_11] : memref<1x3x100xf32, #tpu.memory_space<vmem>>, vector<1x1x100xf32>
    tpu.vector_store %arg4[%c0_10, %c1, %c0_11], %8 {strides = array<i32>} : memref<1x3x100xf32, #tpu.memory_space<vmem>>, vector<1x1x100xf32>,
    %c0_12 = arith.constant 0 : index
    %c2 = arith.constant 2 : index
    %c0_13 = arith.constant 0 : index
    %11 = vector.load %arg4[%c0_12, %c2, %c0_13] : memref<1x3x100xf32, #tpu.memory_space<vmem>>, vector<1x1x100xf32>
    tpu.vector_store %arg4[%c0_12, %c2, %c0_13], %7 {strides = array<i32>} : memref<1x3x100xf32, #tpu.memory_space<vmem>>, vector<1x1x100xf32>,
    return
  }
  func.func @transform_0(%arg0: i32) -> (i32, i32) {
    %c0_i32 = arith.constant 0 : i32
    %c0_i32_0 = arith.constant 0 : i32
    %c0_i32_1 = arith.constant 0 : i32
    return %c0_i32, %c0_i32_0 : i32, i32
  }
  func.func @transform_1(%arg0: i32) -> (i32, i32, i32) {
    %c0_i32 = arith.constant 0 : i32
    %c0_i32_0 = arith.constant 0 : i32
    %c0_i32_1 = arith.constant 0 : i32
    return %arg0, %c0_i32, %c0_i32_0 : i32, i32, i32
  }
  func.func @transform_2(%arg0: i32) -> (i32, i32, i32) {
    %c0_i32 = arith.constant 0 : i32
    %c0_i32_0 = arith.constant 0 : i32
    %c0_i32_1 = arith.constant 0 : i32
    return %arg0, %c0_i32, %c0_i32_0 : i32, i32, i32
  }
  func.func @transform_3(%arg0: i32) -> (i32, i32, i32) {
    %c0_i32 = arith.constant 0 : i32
    %c0_i32_0 = arith.constant 0 : i32
    %c0_i32_1 = arith.constant 0 : i32
    return %arg0, %c0_i32, %c0_i32_0 : i32, i32, i32
  }
}

</mosaic_0001>

<llo_original>
// kernel: tpu_custom_call.1
$region0: #{tpu_custom_call.1}
  #allocation0 [shape = 'u32[]', space=smem, size = 0x4, offset = 0x4, fixed_abs, tag = 'smem constant byte address 0x4 - core index']
  #allocation1 [shape = 'u32[144,128]{1,0:T(1,128)}', space=vmem, size = 0x12000, scoped, tag = 'internal scratch']
  %s0 = inlined_call_operand.vmem [shape: f32[5,1], index: 0, kind: input, shape index: {}]
  %s1 = inlined_call_operand.vmem [shape: f32[1,1,100], index: 1, kind: input, shape index: {}]
  %s2 = inlined_call_operand.vmem [shape: f32[1,5,100], index: 2, kind: input, shape index: {}]
  %s3 = inlined_call_operand.vmem [shape: f32[1,3,100], index: 3, kind: output, shape index: {}]
  %s4 = sld [smem:[#allocation0]]
  $region22: #{tpu_custom_call.1} parent=0
    _
  %s6 = ssub.s32 1, %s4
  %s7 = scalar_select 0, %s6, %s4
  // Predicated region
  $region2: #{tpu_custom_call.1} parent=0 // pred_check
    _
  $region3: #{tpu_custom_call.1} parent=0 // pred_check_branch
    %9 = sbr.rel (0) target = $region5
  $region4: #{tpu_custom_call.1} parent=0 // pred_region
    _
  $region5: #{tpu_custom_call.1} parent=0 // pred_fallthru
    _
  // Predicated region
  $region6: #{tpu_custom_call.1} parent=0 // pred_check
    _
  $region7: #{tpu_custom_call.1} parent=0 // pred_check_branch
    %11 = sbr.rel (0) target = $region9
  $region8: #{tpu_custom_call.1} parent=0 // pred_region
    _
  $region9: #{tpu_custom_call.1} parent=0 // pred_fallthru
    _
  // Predicated region
  $region10: #{tpu_custom_call.1} parent=0 // pred_check
    _
  $region11: #{tpu_custom_call.1} parent=0 // pred_check_branch
    %13 = sbr.rel (0) target = $region13
  $region12: #{tpu_custom_call.1} parent=0 // pred_region
    _
  $region13: #{tpu_custom_call.1} parent=0 // pred_fallthru
    _
  %v14 = vld [vmem:[%s0] sm:$0x1f]
  %v15 = vld [vmem:[%s2] sm:$0x1f]
  %v16 = vld [vmem:[%s1] sm:$0x1]
  %18 = vset.pattern.permute.xlu0 0
  %19 = vperm.xlu0 %18, %v14
  %v20 = vpop.permute.xlu0 %19
  %v22 = vmul.f32 %v15, %v20
  %vm23 = vcmask 815104
  %v24 = vsel %vm23, %v22, 0.0
  %v25 = vrot.slane %v24, 4
  %v26 = vadd.f32 %v24, %v25
  %v27 = vrot.slane %v26, 2
  %v28 = vadd.f32 %v26, %v27
  %v29 = vrot.slane %v28, 1
  %v30 = vadd.f32 %v28, %v29
  %v31 = vmul.f32 %v16, %v30
  %vm32 = vcmask 811008
  %33 = vst.msk [vmem:[%s3] sm:$0x1] %vm32, %v16
  %34 = vst.msk [vmem:[%s3 + $0x1] sm:$0x1] %vm32, %v31
  %35 = vst.msk [vmem:[%s3 + $0x2] sm:$0x1] %vm32, %v30
  // Predicated region
  $region14: #{tpu_custom_call.1} parent=0 // pred_check
    _
  $region15: #{tpu_custom_call.1} parent=0 // pred_check_branch
    %37 = sbr.rel (0) target = $region17
  $region16: #{tpu_custom_call.1} parent=0 // pred_region
    _
  $region17: #{tpu_custom_call.1} parent=0 // pred_fallthru
    _
  // Predicated region
  $region18: #{tpu_custom_call.1} parent=0 // pred_check
    _
  $region19: #{tpu_custom_call.1} parent=0 // pred_check_branch
    %39 = sbr.rel (0) target = $region21
  $region20: #{tpu_custom_call.1} parent=0 // pred_region
    _
  $region21: #{tpu_custom_call.1} parent=0 // pred_fallthru
    _

</llo_original>
